<compile_context>
chip_gen: v6e
topology: v6e:2x2x1
jax: 0.10.0
libtpu: 0.0.40
codegen_flags: <defaults>
</compile_context>

<pallas_src>
import functools

import jax
import jax.numpy as jnp
from jax.experimental import pallas as pl
from jax.experimental.pallas import tpu as pltpu

D1, D2 = 60, 40          # split of the 100 input features between x_1 and x_2
IN_F = D1 + D2           # nn.Linear in_features  = 100
OUT_F = 5                # nn.Linear out_features = 5
K_PAD = 128              # contraction padded to one lane tile (100 feats + 1 bias col + zeros)
N_PAD = 128              # output padded lane-dense -> unmasked 128-wide stores


def fcnet_kernel(x_ref, w_ref, o_ref):
    # Single MXU pass: y_padded = x_aug @ W_aug   (bias already inside W_aug row 100)
    o_ref[...] = jnp.dot(
        x_ref[...], w_ref[...], preferred_element_type=jnp.float32
    ).astype(o_ref.dtype)


def pack_params(weight, bias):
    """Pack PyTorch-layout weight (out, in) + bias (out,) into ONE (K_PAD, N_PAD)
    augmented slab.  Call once at model load — not per forward call."""
    out_f, in_f = weight.shape
    assert in_f + 1 <= K_PAD and out_f <= N_PAD
    w = jnp.zeros((K_PAD, N_PAD), dtype=weight.dtype)
    w = w.at[:in_f, :out_f].set(weight.T)   # W.T  -> rows [0, in_f)
    w = w.at[in_f, :out_f].set(bias)        # bias -> row in_f (matches the ones-column)
    return w


@jax.jit
def fcnet_forward(x1, x2, w_packed):
    """x1: (B, D1), x2: (B, D2), w_packed: (K_PAD, N_PAD) from pack_params."""
    B, d1 = x1.shape
    d2 = x2.shape[1]
    in_f = d1 + d2
    dtype = x1.dtype

    # Augmented input [x1 | x2 | 1 | 0...], padded to (B_pad, 128).
    # (concat + pad fuse under jit; padded rows are all-zero -> zero outputs, sliced off)
    ones = jnp.ones((B, 1), dtype=dtype)
    x_cat = jnp.concatenate([x1, x2, ones], axis=1)            # (B, in_f + 1)

    tb = 512 if B > 512 else max(8, -(-B // 8) * 8)            # batch tile (sublane-aligned)
    b_pad = -(-B // tb) * tb
    x_aug = jnp.pad(x_cat, ((0, b_pad - B), (0, K_PAD - (in_f + 1))))

    out_padded = pl.pallas_call(
        fcnet_kernel,
        out_shape=jax.ShapeDtypeStruct((b_pad, N_PAD), dtype),
        grid_spec=pltpu.PrefetchScalarGridSpec(
            num_scalar_prefetch=0,
            grid=(b_pad // tb,),
            in_specs=[
                pl.BlockSpec((tb, K_PAD), lambda i: (i, 0)),       # batch tile of x_aug
                pl.BlockSpec((K_PAD, N_PAD), lambda i: (0, 0)),    # whole packed weight
            ],
            out_specs=pl.BlockSpec((tb, N_PAD), lambda i: (i, 0)),  # lane-dense output
        ),
        compiler_params=pltpu.CompilerParams(
            dimension_semantics=("parallel",),   # batch tiles split across TCs (v7x)
        ),
    )(x_aug, w_packed)

    return out_padded[:B, :OUT_F]


if __name__ == "__main__":
    key = jax.random.PRNGKey(0)
    k_x1, k_x2, k_w, k_b = jax.random.split(key, 4)

    B = 2
    x1 = jax.random.normal(k_x1, (B, D1), dtype=jnp.float32)
    x2 = jax.random.normal(k_x2, (B, D2), dtype=jnp.float32)

    # Deterministic PyTorch-style init: U(-1/sqrt(in), 1/sqrt(in))
    bound = 1.0 / jnp.sqrt(jnp.float32(IN_F))
    weight = jax.random.uniform(k_w, (OUT_F, IN_F),
                                minval=-bound, maxval=bound, dtype=jnp.float32)
    bias = jax.random.uniform(k_b, (OUT_F,),
                              minval=-bound, maxval=bound, dtype=jnp.float32)

    # One-time parameter packing (hoisted out of the per-call path).
    w_packed = pack_params(weight, bias)

    y = fcnet_forward(x1, x2, w_packed)
    y = jax.block_until_ready(y)

    # Pure-JAX reference for sanity.
    y_ref = jnp.concatenate((x1, x2), axis=1) @ weight.T + bias
    assert y.shape == (B, OUT_F)
    assert jnp.allclose(y, y_ref, atol=1e-5, rtol=1e-5)

    print("KERNEL_OK")
</pallas_src>

<mosaic_0001>
module attributes {stable_mosaic.version = 11 : i64} {
  func.func @fcnet_kernel(%arg0: i32, %arg1: memref<8x128xf32, #tpu.memory_space<vmem>>, %arg2: memref<128x128xf32, #tpu.memory_space<vmem>>, %arg3: memref<8x128xf32, #tpu.memory_space<vmem>>) attributes {dimension_semantics = [#tpu.dimension_semantics<parallel>], iteration_bounds = array<i64: 1>, scalar_prefetch = 0 : i64, scratch_operands = 0 : i64, tpu.core_type = #tpu.core_type<tc>, window_params = [{transform_indices = @transform_0, window_bounds = array<i64: 8, 128>}, {pipeline_mode = #tpu.pipeline_mode<synchronous>, transform_indices = @transform_1, window_bounds = array<i64: 128, 128>}, {transform_indices = @transform_2, window_bounds = array<i64: 8, 128>}]} {
    %c0 = arith.constant 0 : index
    %c0_0 = arith.constant 0 : index
    %0 = vector.load %arg1[%c0, %c0_0] : memref<8x128xf32, #tpu.memory_space<vmem>>, vector<8x128xf32>
    %c0_1 = arith.constant 0 : index
    %c0_2 = arith.constant 0 : index
    %1 = vector.load %arg2[%c0_1, %c0_2] : memref<128x128xf32, #tpu.memory_space<vmem>>, vector<128x128xf32>
    %cst = arith.constant dense<0.000000e+00> : vector<8x128xf32>
    %2 = tpu.matmul %0, %1, %cst {dimension_numbers = #tpu.dot_dimension_numbers<[1], [0], [0], [1], [0, 0, 1, 1], [], []>} : vector<8x128xf32>, vector<128x128xf32>, vector<8x128xf32> -> vector<8x128xf32>
    %c0_3 = arith.constant 0 : index
    %c0_4 = arith.constant 0 : index
    %3 = vector.load %arg3[%c0_3, %c0_4] : memref<8x128xf32, #tpu.memory_space<vmem>>, vector<8x128xf32>
    tpu.vector_store %arg3[%c0_3, %c0_4], %2 {strides = array<i32>} : memref<8x128xf32, #tpu.memory_space<vmem>>, vector<8x128xf32>,
    return
  }
  func.func @transform_0(%arg0: i32) -> (i32, i32) {
    %c0_i32 = arith.constant 0 : i32
    %c0_i32_0 = arith.constant 0 : i32
    return %arg0, %c0_i32 : i32, i32
  }
  func.func @transform_1(%arg0: i32) -> (i32, i32) {
    %c0_i32 = arith.constant 0 : i32
    %c0_i32_0 = arith.constant 0 : i32
    %c0_i32_1 = arith.constant 0 : i32
    return %c0_i32, %c0_i32_0 : i32, i32
  }
  func.func @transform_2(%arg0: i32) -> (i32, i32) {
    %c0_i32 = arith.constant 0 : i32
    %c0_i32_0 = arith.constant 0 : i32
    return %arg0, %c0_i32 : i32, i32
  }
}

</mosaic_0001>

<llo_original>
// kernel: fcnet_forward.1
$region0: #{fcnet_forward.1}
  #allocation0 [shape = 'u32[]', space=smem, size = 0x4, offset = 0x4, fixed_abs, tag = 'smem constant byte address 0x4 - core index']
  #allocation1 [shape = 'u32[144,128]{1,0:T(1,128)}', space=vmem, size = 0x12000, scoped, tag = 'internal scratch']
  %s0 = inlined_call_operand.vmem [shape: f32[8,128], index: 0, kind: input, shape index: {}]
  %s1 = inlined_call_operand.hbm [shape: f32[128,128], index: 1, kind: input, shape index: {}]
  %s2 = inlined_call_operand.vmem [shape: f32[8,128], index: 2, kind: output, shape index: {}]
  %s3 = sld [smem:[#allocation0]]
  $region22: #{fcnet_forward.1} parent=0
    _
  %s5 = ssub.s32 1, %s3
  %s6 = scalar_select 0, %s5, %s3
  $region1: #{fcnet_forward.1} parent=0
    #allocation2 [shape = 'u8[65536]{0}', space=vmem, size = 0x10000, scoped, tag = 'input window, operand 1, single buffered']
    #allocation3 [shape = 's32[1]{0}', space=sflag, size = 0x4, scoped, tag = 'scoped memory for fcnet_forward.1']
    %7 = vsyncpa [#allocation3], 0
    // Predicated region
    $region2: #{fcnet_forward.1} parent=1 // pred_check
      _
    $region3: #{fcnet_forward.1} parent=1 // pred_check_branch
      %9 = sbr.rel (0) target = $region5
    $region4: #{fcnet_forward.1} parent=1 // pred_region
      _
    $region5: #{fcnet_forward.1} parent=1 // pred_fallthru
      _
    // Predicated region
    $region6: #{fcnet_forward.1} parent=1 // pred_check
      _
    $region7: #{fcnet_forward.1} parent=1 // pred_check_branch
      %11 = sbr.rel (0) target = $region9
    $region8: #{fcnet_forward.1} parent=1 // pred_region
      %s13 = ssub.s32 2048, 2048
      %14 = vsyncadd [#allocation3], %s13
      %s15 = sshll.u32 [#allocation2], 4
      %s16 = int_to_ptr.vmem [resolvable:$true] %s15
      %21 = dma.hbm_to_vmem [thread:$0]  %s1, 2048, %s16, [#allocation3], 128, 128, 8
    $region9: #{fcnet_forward.1} parent=1 // pred_fallthru
      _
    // Predicated region
    $region10: #{fcnet_forward.1} parent=1 // pred_check
      _
    $region11: #{fcnet_forward.1} parent=1 // pred_check_branch
      %23 = sbr.rel (0) target = $region13
    $region12: #{fcnet_forward.1} parent=1 // pred_region
      %24 = dma.done [#allocation3], 2048
    $region13: #{fcnet_forward.1} parent=1 // pred_fallthru
      _
    %v25 = vld [vmem:[%s0] sm:$0xff]
    %v26 = vld [vmem:[#allocation2] sm:$0xff]
    %v27 = vld [vmem:[#allocation2 + $0x8] sm:$0xff]
    %v28 = vld [vmem:[#allocation2 + $0x10] sm:$0xff]
    %v29 = vld [vmem:[#allocation2 + $0x18] sm:$0xff]
    %v30 = vld [vmem:[#allocation2 + $0x20] sm:$0xff]
    %v31 = vld [vmem:[#allocation2 + $0x28] sm:$0xff]
    %v32 = vld [vmem:[#allocation2 + $0x30] sm:$0xff]
    %v33 = vld [vmem:[#allocation2 + $0x38] sm:$0xff]
    %v34 = vld [vmem:[#allocation2 + $0x40] sm:$0xff]
    %v35 = vld [vmem:[#allocation2 + $0x48] sm:$0xff]
    %v36 = vld [vmem:[#allocation2 + $0x50] sm:$0xff]
    %v37 = vld [vmem:[#allocation2 + $0x58] sm:$0xff]
    %v38 = vld [vmem:[#allocation2 + $0x60] sm:$0xff]
    %v39 = vld [vmem:[#allocation2 + $0x68] sm:$0xff]
    %v40 = vld [vmem:[#allocation2 + $0x70] sm:$0xff]
    %v41 = vld [vmem:[#allocation2 + $0x78] sm:$0xff]
    %42 = vmatprep.subr.mxu0 0.0
    %43 = vmatpush1.msra.mxu0 %v41
    %44 = vmatprep.subr.mxu0 0.0
    %45 = vmatpush1.msra.mxu0 %v40
    %46 = vmatprep.subr.mxu0 0.0
    %47 = vmatpush1.msra.mxu0 %v39
    %48 = vmatprep.subr.mxu0 0.0
    %49 = vmatpush1.msra.mxu0 %v38
    %50 = vmatprep.subr.mxu0 0.0
    %51 = vmatpush1.msra.mxu0 %v37
    %52 = vmatprep.subr.mxu0 0.0
    %53 = vmatpush1.msra.mxu0 %v36
    %54 = vmatprep.subr.mxu0 0.0
    %55 = vmatpush1.msra.mxu0 %v35
    %56 = vmatprep.subr.mxu0 0.0
    %57 = vmatpush1.msra.mxu0 %v34
    %58 = vmatprep.subr.mxu0 0.0
    %59 = vmatpush1.msra.mxu0 %v33
    %60 = vmatprep.subr.mxu0 0.0
    %61 = vmatpush1.msra.mxu0 %v32
    %62 = vmatprep.subr.mxu0 0.0
    %63 = vmatpush1.msra.mxu0 %v31
    %64 = vmatprep.subr.mxu0 0.0
    %65 = vmatpush1.msra.mxu0 %v30
    %66 = vmatprep.subr.mxu0 0.0
    %67 = vmatpush1.msra.mxu0 %v29
    %68 = vmatprep.subr.mxu0 0.0
    %69 = vmatpush1.msra.mxu0 %v28
    %70 = vmatprep.subr.mxu0 0.0
    %71 = vmatpush1.msra.mxu0 %v27
    %72 = vmatprep.subr.mxu0 0.0
    %73 = vmatpush1.msra.mxu0 %v26
    %74 = vmatprep.subr.mxu0 0.0
    %75 = vmatpush2.msra.mxu0 0.0
    %76 = vmatprep.subr.mxu0 0.0
    %77 = vmatpush2.msra.mxu0 0.0
    %78 = vmatprep.subr.mxu0 0.0
    %79 = vmatpush2.msra.mxu0 0.0
    %80 = vmatprep.subr.mxu0 0.0
    %81 = vmatpush2.msra.mxu0 0.0
    %82 = vmatprep.subr.mxu0 0.0
    %83 = vmatpush2.msra.mxu0 0.0
    %84 = vmatprep.subr.mxu0 0.0
    %85 = vmatpush2.msra.mxu0 0.0
    %86 = vmatprep.subr.mxu0 0.0
    %87 = vmatpush2.msra.mxu0 0.0
    %88 = vmatprep.subr.mxu0 0.0
    %89 = vmatpush2.msra.mxu0 0.0
    %90 = vmatprep.subr.mxu0 0.0
    %91 = vmatpush2.msra.mxu0 0.0
    %92 = vmatprep.subr.mxu0 0.0
    %93 = vmatpush2.msra.mxu0 0.0
    %94 = vmatprep.subr.mxu0 0.0
    %95 = vmatpush2.msra.mxu0 0.0
    %96 = vmatprep.subr.mxu0 0.0
    %97 = vmatpush2.msra.mxu0 0.0
    %98 = vmatprep.subr.mxu0 0.0
    %99 = vmatpush2.msra.mxu0 0.0
    %100 = vmatprep.subr.mxu0 0.0
    %101 = vmatpush2.msra.mxu0 0.0
    %102 = vmatprep.subr.mxu0 0.0
    %103 = vmatpush2.msra.mxu0 0.0
    %104 = vmatprep.subr.mxu0 0.0
    %105 = vmatpush2.msra.mxu0 0.0
    %106 = vmatprep.mubr.f32.mxu0 0.0
    %107 = vmatmul.mubr.f32.gmra.mxu0 %v25
    %v108 = vpop.f32.mrf.mxu0
    %v109 = vadd.f32 0.0, %v108
    %v110 = vpop.f32.mrf.mxu0
    %111 = vdwg.mxu0
    %112 = vst [vmem:[%s2] sm:$0xff] %v109
    // Predicated region
    $region14: #{fcnet_forward.1} parent=1 // pred_check
      _
    $region15: #{fcnet_forward.1} parent=1 // pred_check_branch
      %114 = sbr.rel (0) target = $region17
    $region16: #{fcnet_forward.1} parent=1 // pred_region
      _
    $region17: #{fcnet_forward.1} parent=1 // pred_fallthru
      _
    // Predicated region
    $region18: #{fcnet_forward.1} parent=1 // pred_check
      _
    $region19: #{fcnet_forward.1} parent=1 // pred_check_branch
      %116 = sbr.rel (0) target = $region21
    $region20: #{fcnet_forward.1} parent=1 // pred_region
      _
    $region21: #{fcnet_forward.1} parent=1 // pred_fallthru
      _
    %117 = vsyncpa [#allocation3], 1

</llo_original>
